<compile_context>
chip_gen: v7x
topology: tpu7x:2x2x1
jax: 0.10.0
libtpu: 0.0.40
codegen_flags: <defaults>
</compile_context>

<pallas_src>
from functools import partial

import jax
import jax.numpy as jnp
from jax.experimental import pallas as pl
from jax.experimental.pallas import tpu as pltpu

EPS = 1e-5
_HIGH = jax.lax.Precision.HIGHEST


# ----------------------------- small helpers ---------------------------------
def _round_up(n, m):
    return ((n + m - 1) // m) * m


def _pad_last(a, n):
    p = n - a.shape[-1]
    return a if p <= 0 else jnp.pad(a, [(0, 0)] * (a.ndim - 1) + [(0, p)])


def _pad_first(a, n):
    p = n - a.shape[0]
    return a if p <= 0 else jnp.pad(a, [(0, p)] + [(0, 0)] * (a.ndim - 1))


def _default_tile_m():
    # v5e: 4x128x128 MXU + 16 MiB scoped-VMEM default -> 128-row tiles.
    # v6e / v7x: 256x256 MXU -> 256-row tiles.
    try:
        kind = jax.devices()[0].device_kind.lower()
    except Exception:
        kind = ""
    return 128 if ("v5e" in kind or "v5 lite" in kind or "v5litepod" in kind) else 256


# ----------------------------- Pallas kernel ---------------------------------
def _mlp2_kernel(x_ref, w1_ref, b1_ref, w2_ref, b2_ref, o_ref):
    """out = relu(relu(x @ w1 + b1) @ w2 + b2)  (BN scale folded into w, bias)."""
    h = jnp.dot(x_ref[...], w1_ref[...], preferred_element_type=jnp.float32)
    h = jnp.maximum(h + b1_ref[...], 0.0)
    h = jnp.dot(h, w2_ref[...], preferred_element_type=jnp.float32)
    h = jnp.maximum(h + b2_ref[...], 0.0)
    o_ref[...] = h.astype(o_ref.dtype)


def fused_mlp2(x, w1, b1, w2, b2, *, tile_m=256):
    """Two fused (matmul + bias + ReLU) layers in one pallas_call.

    x  : (M, K)      w1 : (K, C)      b1 : (1, C)
                     w2 : (C, C)      b2 : (1, C)     -> out (M, C)

    Small M  -> one whole-array VMEM block, NO grid (no pipeline prologue /
                epilogue for launch-overhead-bound shapes).
    Large M  -> rows padded to a multiple of tile_m, 1-D row-tiled "parallel"
                grid (megacore-shardable on v7x); constant-index weight blocks
                stay resident in VMEM.
    """
    M, K = x.shape
    C = w2.shape[1]
    out_dtype = x.dtype

    if M <= tile_m:
        return pl.pallas_call(
            _mlp2_kernel,
            out_shape=jax.ShapeDtypeStruct((M, C), out_dtype),
        )(x, w1, b1, w2, b2)

    Mp = _round_up(M, tile_m)
    xp = x if Mp == M else jnp.pad(x, ((0, Mp - M), (0, 0)))
    grid = (Mp // tile_m,)

    def const_spec(shape):
        return pl.BlockSpec(shape, lambda i: (0, 0))

    out = pl.pallas_call(
        _mlp2_kernel,
        out_shape=jax.ShapeDtypeStruct((Mp, C), out_dtype),
        grid=grid,
        in_specs=[
            pl.BlockSpec((tile_m, K), lambda i: (i, 0)),
            const_spec(w1.shape),
            const_spec(b1.shape),
            const_spec(w2.shape),
            const_spec(b2.shape),
        ],
        out_specs=pl.BlockSpec((tile_m, C), lambda i: (i, 0)),
        compiler_params=pltpu.CompilerParams(
            dimension_semantics=("parallel",)),
    )(xp, w1, b1, w2, b2)
    return out if Mp == M else out[:M]


# ----------------------------- forward (jitted) ------------------------------
@partial(jax.jit, static_argnames=("unit_size", "reverse", "tile_m"))
def _resbase_forward(p, x, *, unit_size, reverse, tile_m):
    B, cin, L = x.shape
    x_flat = x.reshape(B, cin * L)            # cin == 1
    if reverse:
        # x.detach() sits between features() and linear1() in PyTorch; with the
        # full algebraic fold the forward value is unchanged (identity).
        x_flat = jax.lax.stop_gradient(x_flat)
    y = fused_mlp2(x_flat, p["w1"], p["b1"], p["w2"], p["b2"], tile_m=tile_m)
    # TODO(synk): training-mode F.dropout (random mask) not implemented;
    # forward here matches eval-mode (dropout = identity).
    return y[:, :unit_size]                   # drop the 100 -> 128 lane padding


# --------------------------------- module ------------------------------------
class ResBase:
    """JAX/Pallas mirror of the PyTorch ResBase (inference forward pass)."""

    def __init__(self, len_features, option="resnet18", pret=False,
                 unit_size=100, *, key):
        self.len_features = len_features
        self.unit_size = unit_size
        self.dim = 2048 * len_features
        self.tile_m = _default_tile_m()

        keys = iter(jax.random.split(key, 64))
        nk = lambda: next(keys)

        def conv_w(cout, cin):
            return jax.random.normal(nk(), (cout, cin), jnp.float32) * (cin ** -0.5)

        def bn_p(c):
            return dict(
                gamma=jax.random.uniform(nk(), (c,), jnp.float32, 0.8, 1.2),
                beta=jax.random.normal(nk(), (c,), jnp.float32) * 0.05,
                mean=jax.random.normal(nk(), (c,), jnp.float32) * 0.05,
                var=jax.random.uniform(nk(), (c,), jnp.float32, 0.8, 1.2),
            )

        def lin_p(cout, cin):
            w = jax.random.normal(nk(), (cout, cin), jnp.float32) * (cin ** -0.5)
            b = jax.random.normal(nk(), (cout,), jnp.float32) * 0.05
            return w, b

        tp = {}
        tp["conv1"] = conv_w(64, 1);      tp["conv12"] = conv_w(64, 64);      tp["bn1"] = bn_p(64)
        tp["conv2"] = conv_w(128, 64);    tp["conv22"] = conv_w(128, 128);    tp["bn2"] = bn_p(128)
        tp["conv3"] = conv_w(256, 128);   tp["conv32"] = conv_w(256, 256);    tp["bn3"] = bn_p(256)
        tp["conv4"] = conv_w(512, 256);   tp["conv42"] = conv_w(512, 512);    tp["bn4"] = bn_p(512)
        tp["conv5"] = conv_w(1024, 512);  tp["conv52"] = conv_w(1024, 1024);  tp["bn5"] = bn_p(1024)
        tp["conv6"] = conv_w(2048, 1024);                                     tp["bn6"] = bn_p(2048)
        tp["linear1"] = lin_p(unit_size, self.dim);  tp["bn7"] = bn_p(unit_size)
        tp["linear2"] = lin_p(unit_size, unit_size); tp["bn8"] = bn_p(unit_size)
        # linear3/linear4/bn9/bn10 are dead in forward(); allocated only for parity.
        tp["linear3"] = lin_p(unit_size, unit_size); tp["bn9"] = bn_p(unit_size)
        tp["linear4"] = lin_p(unit_size, unit_size); tp["bn10"] = bn_p(unit_size)
        self.torch_params = tp

        self.pallas_params = self._preprocess(tp)

    # ---- one-time algebraic folding of the whole linear prefix ---------------
    def _preprocess(self, tp):
        P = _HIGH
        mv = lambda A, v: jnp.matmul(A, v, precision=P)

        def bn_st(bn):
            s = bn["gamma"] / jnp.sqrt(bn["var"] + EPS)
            return s, bn["beta"] - bn["mean"] * s

        # fold the (purely linear) feature chain: features(x)[b, :, l] = x[b,0,l]*a + cv
        a = tp["conv1"][:, 0]                  # conv1 applied to the single input channel
        cv = jnp.zeros_like(a)

        def stage(a, cv, convs, bn):
            for w in convs:
                a, cv = mv(w, a), mv(w, cv)
            s, t = bn_st(bn)
            return a * s, cv * s + t

        a, cv = stage(a, cv, (tp["conv12"],), tp["bn1"])
        a, cv = stage(a, cv, (tp["conv2"], tp["conv22"]), tp["bn2"])
        a, cv = stage(a, cv, (tp["conv3"], tp["conv32"]), tp["bn3"])
        a, cv = stage(a, cv, (tp["conv4"], tp["conv42"]), tp["bn4"])
        a, cv = stage(a, cv, (tp["conv5"], tp["conv52"]), tp["bn5"])
        a, cv = stage(a, cv, (tp["conv6"],), tp["bn6"])          # a, cv: (2048,)

        # fold PyTorch flatten order (index c*L + l) + linear1 + bn7
        L, U = self.len_features, self.unit_size
        w1, b1 = tp["linear1"]                 # (U, 2048*L), (U,)
        w1r = w1.reshape(U, 2048, L)
        m = jnp.einsum("ucl,c->lu", w1r, a, precision=P)        # (L, U)
        k = jnp.einsum("ucl,c->u", w1r, cv, precision=P) + b1   # (U,)
        s7, t7 = bn_st(tp["bn7"])
        W1e = m * s7[None, :]
        b1e = k * s7 + t7

        # linear2 + bn8
        w2, b2 = tp["linear2"]
        s8, t8 = bn_st(tp["bn8"])
        W2e = w2.T * s8[None, :]
        b2e = b2 * s8 + t8

        # pad the unit_size axis to 128 lanes (lane-dense stores; padded lanes
        # have zero weight/bias -> relu(0) = 0 and are sliced off in the wrapper)
        C = _round_up(U, 128)
        return dict(
            w1=_pad_last(W1e, C),
            b1=_pad_last(b1e.reshape(1, -1), C),
            w2=_pad_last(_pad_first(W2e, C), C),
            b2=_pad_last(b2e.reshape(1, -1), C),
        )

    def __call__(self, x, reverse=False):
        return _resbase_forward(self.pallas_params, x,
                                unit_size=self.unit_size,
                                reverse=bool(reverse),
                                tile_m=self.tile_m)

    # ---- pure-JAX reference in PyTorch layout (for correctness checks) ------
    def reference(self, x):
        tp = self.torch_params
        P = _HIGH

        def conv(h, w):  # h: (B, C_in, L), w: (C_out, C_in)
            return jnp.einsum("oc,bcl->bol", w, h, precision=P)

        def bn_c(h, bn):  # channel axis 1 of (B, C, L)
            s = bn["gamma"] / jnp.sqrt(bn["var"] + EPS)
            t = bn["beta"] - bn["mean"] * s
            return h * s[None, :, None] + t[None, :, None]

        def bn_f(h, bn):  # feature axis 1 of (B, F)
            s = bn["gamma"] / jnp.sqrt(bn["var"] + EPS)
            t = bn["beta"] - bn["mean"] * s
            return h * s[None, :] + t[None, :]

        h = x
        h = conv(h, tp["conv1"]); h = conv(h, tp["conv12"]); h = bn_c(h, tp["bn1"])
        h = conv(h, tp["conv2"]); h = conv(h, tp["conv22"]); h = bn_c(h, tp["bn2"])
        h = conv(h, tp["conv3"]); h = conv(h, tp["conv32"]); h = bn_c(h, tp["bn3"])
        h = conv(h, tp["conv4"]); h = conv(h, tp["conv42"]); h = bn_c(h, tp["bn4"])
        h = conv(h, tp["conv5"]); h = conv(h, tp["conv52"]); h = bn_c(h, tp["bn5"])
        h = conv(h, tp["conv6"]); h = bn_c(h, tp["bn6"])
        h = h.reshape(h.shape[0], -1)            # same ordering as torch .view
        w1, b1 = tp["linear1"]
        h = jnp.maximum(bn_f(jnp.dot(h, w1.T, precision=P) + b1, tp["bn7"]), 0.0)
        w2, b2 = tp["linear2"]
        h = jnp.maximum(bn_f(jnp.dot(h, w2.T, precision=P) + b2, tp["bn8"]), 0.0)
        return h


# ----------------------------------- main -------------------------------------
if __name__ == "__main__":
    key = jax.random.PRNGKey(0)
    k_x, k_p, k_big = jax.random.split(key, 3)

    B, L = 4, 8          # batch, len_features  (dim = 2048 * 8 = 16384)
    unit_size = 100

    x = jax.random.normal(k_x, (B, 1, L), jnp.float32)
    model = ResBase(len_features=L, unit_size=unit_size, key=k_p)

    y = jax.block_until_ready(model(x))
    y_rev = jax.block_until_ready(model(x, reverse=True))
    y_ref = model.reference(x)

    assert y.shape == (B, unit_size)
    err = float(jnp.max(jnp.abs(y - y_ref)))
    assert jnp.allclose(y, y_ref, atol=2e-2, rtol=2e-2), f"max err {err}"
    assert jnp.allclose(y_rev, y_ref, atol=2e-2, rtol=2e-2), "reverse path mismatch"

    # Larger, ragged batch -> exercises the padded row-tiled "parallel" grid path.
    Bb = 1030
    xb = jax.random.normal(k_big, (Bb, 1, L), jnp.float32)
    yb = jax.block_until_ready(model(xb))
    yb_ref = model.reference(xb)
    errb = float(jnp.max(jnp.abs(yb - yb_ref)))
    assert yb.shape == (Bb, unit_size)
    assert jnp.allclose(yb, yb_ref, atol=2e-2, rtol=2e-2), f"max err {errb}"

    print("KERNEL_OK")
</pallas_src>

<mosaic_0001>
module attributes {stable_mosaic.version = 11 : i64} {
  func.func @_mlp2_kernel(%arg0: memref<4x8xf32, #tpu.memory_space<vmem>>, %arg1: memref<8x128xf32, #tpu.memory_space<vmem>>, %arg2: memref<1x128xf32, #tpu.memory_space<vmem>>, %arg3: memref<128x128xf32, #tpu.memory_space<vmem>>, %arg4: memref<1x128xf32, #tpu.memory_space<vmem>>, %arg5: memref<4x128xf32, #tpu.memory_space<vmem>>) attributes {dimension_semantics = [], scalar_prefetch = 0 : i64, scratch_operands = 0 : i64, tpu.core_type = #tpu.core_type<tc>} {
    %c0 = arith.constant 0 : index
    %c0_0 = arith.constant 0 : index
    %0 = vector.load %arg0[%c0, %c0_0] : memref<4x8xf32, #tpu.memory_space<vmem>>, vector<4x8xf32>
    %c0_1 = arith.constant 0 : index
    %c0_2 = arith.constant 0 : index
    %1 = vector.load %arg1[%c0_1, %c0_2] : memref<8x128xf32, #tpu.memory_space<vmem>>, vector<8x128xf32>
    %cst = arith.constant dense<0.000000e+00> : vector<4x128xf32>
    %2 = tpu.matmul %0, %1, %cst {dimension_numbers = #tpu.dot_dimension_numbers<[1], [0], [0], [1], [0, 0, 1, 1], [], []>} : vector<4x8xf32>, vector<8x128xf32>, vector<4x128xf32> -> vector<4x128xf32>
    %c0_3 = arith.constant 0 : index
    %c0_4 = arith.constant 0 : index
    %3 = vector.load %arg2[%c0_3, %c0_4] : memref<1x128xf32, #tpu.memory_space<vmem>>, vector<1x128xf32>
    %4 = vector.broadcast %3 : vector<1x128xf32> to vector<4x128xf32>
    %5 = arith.addf %2, %4 : vector<4x128xf32>
    %cst_5 = arith.constant 0.000000e+00 : f32
    %6 = vector.broadcast %cst_5 : f32 to vector<4x128xf32>
    %7 = arith.maximumf %5, %6 : vector<4x128xf32>
    %c0_6 = arith.constant 0 : index
    %c0_7 = arith.constant 0 : index
    %8 = vector.load %arg3[%c0_6, %c0_7] : memref<128x128xf32, #tpu.memory_space<vmem>>, vector<128x128xf32>
    %cst_8 = arith.constant dense<0.000000e+00> : vector<4x128xf32>
    %9 = tpu.matmul %7, %8, %cst_8 {dimension_numbers = #tpu.dot_dimension_numbers<[1], [0], [0], [1], [0, 0, 1, 1], [], []>} : vector<4x128xf32>, vector<128x128xf32>, vector<4x128xf32> -> vector<4x128xf32>
    %c0_9 = arith.constant 0 : index
    %c0_10 = arith.constant 0 : index
    %10 = vector.load %arg4[%c0_9, %c0_10] : memref<1x128xf32, #tpu.memory_space<vmem>>, vector<1x128xf32>
    %11 = vector.broadcast %10 : vector<1x128xf32> to vector<4x128xf32>
    %12 = arith.addf %9, %11 : vector<4x128xf32>
    %cst_11 = arith.constant 0.000000e+00 : f32
    %13 = vector.broadcast %cst_11 : f32 to vector<4x128xf32>
    %14 = arith.maximumf %12, %13 : vector<4x128xf32>
    %c0_12 = arith.constant 0 : index
    %c0_13 = arith.constant 0 : index
    %15 = vector.load %arg5[%c0_12, %c0_13] : memref<4x128xf32, #tpu.memory_space<vmem>>, vector<4x128xf32>
    tpu.vector_store %arg5[%c0_12, %c0_13], %14 {strides = array<i32>} : memref<4x128xf32, #tpu.memory_space<vmem>>, vector<4x128xf32>,
    return
  }
}

</mosaic_0001>

<llo_original>
// kernel: _resbase_forward.1
$region0: #{_resbase_forward.1}
  #allocation0 [shape = 'u32[]', space=smem, size = 0x4, offset = 0x4, fixed_abs, tag = 'smem constant byte address 0x4 - core index']
  #allocation1 [shape = 'u32[144,128]{1,0:T(1,128)}', space=vmem, size = 0x12000, scoped, tag = 'internal scratch']
  %s0 = inlined_call_operand.vmem [shape: f32[4,8], index: 0, kind: input, shape index: {}]
  %s1 = inlined_call_operand.vmem [shape: f32[8,128], index: 1, kind: input, shape index: {}]
  %s2 = inlined_call_operand.vmem [shape: f32[1,128], index: 2, kind: input, shape index: {}]
  %s3 = inlined_call_operand.hbm [shape: f32[128,128], index: 3, kind: input, shape index: {}]
  %s4 = inlined_call_operand.vmem [shape: f32[1,128], index: 4, kind: input, shape index: {}]
  %s5 = inlined_call_operand.hbm [shape: f32[4,128], index: 5, kind: output, shape index: {}]
  %s6 = sld [smem:[#allocation0]]
  $region34: #{_resbase_forward.1} parent=0
    _
  %s8 = ssub.s32 1, %s6
  %s9 = scalar_select 0, %s8, %s6
  $region1: #{_resbase_forward.1} parent=0
    #allocation2 [shape = 'u8[65536]{0}', space=vmem, size = 0x10000, scoped, tag = 'input window, operand 3, single buffered']
    #allocation3 [shape = 's32[1]{0}', space=sflag, size = 0x4, scoped, tag = 'scoped memory for _resbase_forward.1']
    #allocation4 [shape = 's32[1]{0}', space=sflag, size = 0x4, scoped, tag = 'scoped memory for _resbase_forward.1']
    #allocation5 [shape = 'u8[2048]{0}', space=vmem, size = 0x800, scoped, tag = 'output window, operand 0, single buffered']
    %10 = vsyncpa [#allocation3], 0
    %11 = vsyncpa [#allocation4], 0
    // Predicated region
    $region2: #{_resbase_forward.1} parent=1 // pred_check
      _
    $region3: #{_resbase_forward.1} parent=1 // pred_check_branch
      %13 = sbr.rel (0) target = $region5
    $region4: #{_resbase_forward.1} parent=1 // pred_region
      _
    $region5: #{_resbase_forward.1} parent=1 // pred_fallthru
      _
    // Predicated region
    $region6: #{_resbase_forward.1} parent=1 // pred_check
      _
    $region7: #{_resbase_forward.1} parent=1 // pred_check_branch
      %15 = sbr.rel (0) target = $region9
    $region8: #{_resbase_forward.1} parent=1 // pred_region
      _
    $region9: #{_resbase_forward.1} parent=1 // pred_fallthru
      _
    // Predicated region
    $region10: #{_resbase_forward.1} parent=1 // pred_check
      _
    $region11: #{_resbase_forward.1} parent=1 // pred_check_branch
      %17 = sbr.rel (0) target = $region13
    $region12: #{_resbase_forward.1} parent=1 // pred_region
      _
    $region13: #{_resbase_forward.1} parent=1 // pred_fallthru
      _
    // Predicated region
    $region14: #{_resbase_forward.1} parent=1 // pred_check
      _
    $region15: #{_resbase_forward.1} parent=1 // pred_check_branch
      %19 = sbr.rel (0) target = $region17
    $region16: #{_resbase_forward.1} parent=1 // pred_region
      %s21 = ssub.s32 2048, 2048
      %22 = vsyncadd [#allocation3], %s21
      %s23 = sshll.u32 [#allocation2], 4
      %s24 = int_to_ptr.vmem [resolvable:$true] %s23
      %29 = dma.hbm_to_vmem [thread:$0]  %s3, 2048, %s24, [#allocation3], 128, 128, 8
    $region17: #{_resbase_forward.1} parent=1 // pred_fallthru
      _
    // Predicated region
    $region18: #{_resbase_forward.1} parent=1 // pred_check
      _
    $region19: #{_resbase_forward.1} parent=1 // pred_check_branch
      %31 = sbr.rel (0) target = $region21
    $region20: #{_resbase_forward.1} parent=1 // pred_region
      _
    $region21: #{_resbase_forward.1} parent=1 // pred_fallthru
      _
    // Predicated region
    $region22: #{_resbase_forward.1} parent=1 // pred_check
      _
    $region23: #{_resbase_forward.1} parent=1 // pred_check_branch
      %33 = sbr.rel (0) target = $region25
    $region24: #{_resbase_forward.1} parent=1 // pred_region
      %34 = dma.done [#allocation3], 2048
    $region25: #{_resbase_forward.1} parent=1 // pred_fallthru
      _
    %v35 = vld [vmem:[%s0] sm:$0xf]
    %v36 = vld [vmem:[%s1] sm:$0xff]
    %v37 = vld [vmem:[%s2] sm:$0x1]
    %v39 = vlaneseq
    %v40 = vshrl.u32 %v39, 7
    %v41 = vsub.s32 0, %v40
    %v42 = vrot.slane %v37, %v41
    %vm44 = vcmask 64512
    %v46 = vsel %vm44, %v35, 0
    %48 = vmatprep.subr.mxu0 0.0
    %49 = vmatpush1.msra.mxu0 %v36
    %50 = vmatprep.subr.mxu0 0.0
    %51 = vmatpush1.msra.mxu0 0.0
    %52 = vmatprep.subr.mxu0 0.0
    %53 = vmatpush1.msra.mxu0 0.0
    %54 = vmatprep.subr.mxu0 0.0
    %55 = vmatpush1.msra.mxu0 0.0
    %56 = vmatprep.subr.mxu0 0.0
    %57 = vmatpush1.msra.mxu0 0.0
    %58 = vmatprep.subr.mxu0 0.0
    %59 = vmatpush1.msra.mxu0 0.0
    %60 = vmatprep.subr.mxu0 0.0
    %61 = vmatpush1.msra.mxu0 0.0
    %62 = vmatprep.subr.mxu0 0.0
    %63 = vmatpush1.msra.mxu0 0.0
    %64 = vmatprep.subr.mxu0 0.0
    %65 = vmatpush1.msra.mxu0 0.0
    %66 = vmatprep.subr.mxu0 0.0
    %67 = vmatpush1.msra.mxu0 0.0
    %68 = vmatprep.subr.mxu0 0.0
    %69 = vmatpush1.msra.mxu0 0.0
    %70 = vmatprep.subr.mxu0 0.0
    %71 = vmatpush1.msra.mxu0 0.0
    %72 = vmatprep.subr.mxu0 0.0
    %73 = vmatpush1.msra.mxu0 0.0
    %74 = vmatprep.subr.mxu0 0.0
    %75 = vmatpush1.msra.mxu0 0.0
    %76 = vmatprep.subr.mxu0 0.0
    %77 = vmatpush1.msra.mxu0 0.0
    %78 = vmatprep.subr.mxu0 0.0
    %79 = vmatpush1.msra.mxu0 0.0
    %80 = vmatprep.subr.mxu0 0.0
    %81 = vmatpush1.msra.mxu0 0.0
    %82 = vmatprep.subr.mxu0 0.0
    %83 = vmatpush1.msra.mxu0 0.0
    %84 = vmatprep.subr.mxu0 0.0
    %85 = vmatpush1.msra.mxu0 0.0
    %86 = vmatprep.subr.mxu0 0.0
    %87 = vmatpush1.msra.mxu0 0.0
    %88 = vmatprep.subr.mxu0 0.0
    %89 = vmatpush1.msra.mxu0 0.0
    %90 = vmatprep.subr.mxu0 0.0
    %91 = vmatpush1.msra.mxu0 0.0
    %92 = vmatprep.subr.mxu0 0.0
    %93 = vmatpush1.msra.mxu0 0.0
    %94 = vmatprep.subr.mxu0 0.0
    %95 = vmatpush1.msra.mxu0 0.0
    %96 = vmatprep.subr.mxu0 0.0
    %97 = vmatpush1.msra.mxu0 0.0
    %98 = vmatprep.subr.mxu0 0.0
    %99 = vmatpush1.msra.mxu0 0.0
    %100 = vmatprep.subr.mxu0 0.0
    %101 = vmatpush1.msra.mxu0 0.0
    %102 = vmatprep.subr.mxu0 0.0
    %103 = vmatpush1.msra.mxu0 0.0
    %104 = vmatprep.subr.mxu0 0.0
    %105 = vmatpush1.msra.mxu0 0.0
    %106 = vmatprep.subr.mxu0 0.0
    %107 = vmatpush1.msra.mxu0 0.0
    %108 = vmatprep.subr.mxu0 0.0
    %109 = vmatpush1.msra.mxu0 0.0
    %110 = vmatprep.subr.mxu0 0.0
    %111 = vmatpush1.msra.mxu0 0.0
    %112 = vmatprep.mubr.f32.mxu0 0.0
    %113 = vmatmul.mubr.f32.gmra.mrb[0].mxu0 %v46
    %v114 = vpop.f32.mrb[0].mxu0
    %v115 = vadd.f32 %v42, %v114
    %v116 = vpop.f32.mrb[0].mxu0
    %117 = vdwg.mxu0
    %v118 = vmax.f32 %v115, 0.0
    %v119 = vld [vmem:[#allocation2] sm:$0xff]
    %v120 = vld [vmem:[#allocation2 + $0x8] sm:$0xff]
    %v121 = vld [vmem:[#allocation2 + $0x10] sm:$0xff]
    %v122 = vld [vmem:[#allocation2 + $0x18] sm:$0xff]
    %v123 = vld [vmem:[#allocation2 + $0x20] sm:$0xff]
    %v124 = vld [vmem:[#allocation2 + $0x28] sm:$0xff]
    %v125 = vld [vmem:[#allocation2 + $0x30] sm:$0xff]
    %v126 = vld [vmem:[#allocation2 + $0x38] sm:$0xff]
    %v127 = vld [vmem:[#allocation2 + $0x40] sm:$0xff]
    %v128 = vld [vmem:[#allocation2 + $0x48] sm:$0xff]
    %v129 = vld [vmem:[#allocation2 + $0x50] sm:$0xff]
    %v130 = vld [vmem:[#allocation2 + $0x58] sm:$0xff]
    %v131 = vld [vmem:[#allocation2 + $0x60] sm:$0xff]
    %v132 = vld [vmem:[#allocation2 + $0x68] sm:$0xff]
    %v133 = vld [vmem:[#allocation2 + $0x70] sm:$0xff]
    %v134 = vld [vmem:[#allocation2 + $0x78] sm:$0xff]
    %v135 = vld [vmem:[%s4] sm:$0x1]
    %v137 = vlaneseq
    %v138 = vshrl.u32 %v137, 7
    %v139 = vsub.s32 0, %v138
    %v140 = vrot.slane %v135, %v139
    %142 = vmatprep.subr.mxu0 0.0
    %143 = vmatpush1.msra.mxu0 %v119
    %144 = vmatprep.subr.mxu0 0.0
    %145 = vmatpush1.msra.mxu0 %v120
    %146 = vmatprep.subr.mxu0 0.0
    %147 = vmatpush1.msra.mxu0 %v121
    %148 = vmatprep.subr.mxu0 0.0
    %149 = vmatpush1.msra.mxu0 %v122
    %150 = vmatprep.subr.mxu0 0.0
    %151 = vmatpush1.msra.mxu0 %v123
    %152 = vmatprep.subr.mxu0 0.0
    %153 = vmatpush1.msra.mxu0 %v124
    %154 = vmatprep.subr.mxu0 0.0
    %155 = vmatpush1.msra.mxu0 %v125
    %156 = vmatprep.subr.mxu0 0.0
    %157 = vmatpush1.msra.mxu0 %v126
    %158 = vmatprep.subr.mxu0 0.0
    %159 = vmatpush1.msra.mxu0 %v127
    %160 = vmatprep.subr.mxu0 0.0
    %161 = vmatpush1.msra.mxu0 %v128
    %162 = vmatprep.subr.mxu0 0.0
    %163 = vmatpush1.msra.mxu0 %v129
    %164 = vmatprep.subr.mxu0 0.0
    %165 = vmatpush1.msra.mxu0 %v130
    %166 = vmatprep.subr.mxu0 0.0
    %167 = vmatpush1.msra.mxu0 %v131
    %168 = vmatprep.subr.mxu0 0.0
    %169 = vmatpush1.msra.mxu0 %v132
    %170 = vmatprep.subr.mxu0 0.0
    %171 = vmatpush1.msra.mxu0 %v133
    %172 = vmatprep.subr.mxu0 0.0
    %173 = vmatpush1.msra.mxu0 %v134
    %174 = vmatprep.subr.mxu0 0.0
    %175 = vmatpush1.msra.mxu0 0.0
    %176 = vmatprep.subr.mxu0 0.0
    %177 = vmatpush1.msra.mxu0 0.0
    %178 = vmatprep.subr.mxu0 0.0
    %179 = vmatpush1.msra.mxu0 0.0
    %180 = vmatprep.subr.mxu0 0.0
    %181 = vmatpush1.msra.mxu0 0.0
    %182 = vmatprep.subr.mxu0 0.0
    %183 = vmatpush1.msra.mxu0 0.0
    %184 = vmatprep.subr.mxu0 0.0
    %185 = vmatpush1.msra.mxu0 0.0
    %186 = vmatprep.subr.mxu0 0.0
    %187 = vmatpush1.msra.mxu0 0.0
    %188 = vmatprep.subr.mxu0 0.0
    %189 = vmatpush1.msra.mxu0 0.0
    %190 = vmatprep.subr.mxu0 0.0
    %191 = vmatpush1.msra.mxu0 0.0
    %192 = vmatprep.subr.mxu0 0.0
    %193 = vmatpush1.msra.mxu0 0.0
    %194 = vmatprep.subr.mxu0 0.0
    %195 = vmatpush1.msra.mxu0 0.0
    %196 = vmatprep.subr.mxu0 0.0
    %197 = vmatpush1.msra.mxu0 0.0
    %198 = vmatprep.subr.mxu0 0.0
    %199 = vmatpush1.msra.mxu0 0.0
    %200 = vmatprep.subr.mxu0 0.0
    %201 = vmatpush1.msra.mxu0 0.0
    %202 = vmatprep.subr.mxu0 0.0
    %203 = vmatpush1.msra.mxu0 0.0
    %204 = vmatprep.subr.mxu0 0.0
    %205 = vmatpush1.msra.mxu0 0.0
    %206 = vmatprep.mubr.f32.mxu0 0.0
    %207 = vmatmul.mubr.f32.gmra.mrb[0].mxu0 %v118
    %v208 = vpop.f32.mrb[0].mxu0
    %v209 = vadd.f32 %v140, %v208
    %v210 = vpop.f32.mrb[0].mxu0
    %211 = vdwg.mxu0
    %v212 = vmax.f32 %v209, 0.0
    %213 = vst [vmem:[#allocation5] sm:$0xf] %v212
    // Predicated region
    $region26: #{_resbase_forward.1} parent=1 // pred_check
      _
    $region27: #{_resbase_forward.1} parent=1 // pred_check_branch
      %215 = sbr.rel (0) target = $region29
    $region28: #{_resbase_forward.1} parent=1 // pred_region
      %s217 = ssub.s32 64, 64
      %218 = vsyncadd [#allocation4], %s217
      %s220 = sshll.u32 [#allocation5], 4
      %s221 = int_to_ptr.vmem [resolvable:$true] %s220
      %223 = dma.vmem_to_hbm [thread:$0]  %s221, 64, %s5, [#allocation4]
    $region29: #{_resbase_forward.1} parent=1 // pred_fallthru
      _
    // Predicated region
    $region30: #{_resbase_forward.1} parent=1 // pred_check
      _
    $region31: #{_resbase_forward.1} parent=1 // pred_check_branch
      %225 = sbr.rel (0) target = $region33
    $region32: #{_resbase_forward.1} parent=1 // pred_region
      %226 = dma.done [#allocation4], 64
    $region33: #{_resbase_forward.1} parent=1 // pred_fallthru
      _
    %227 = vsyncpa [#allocation3], 1
    %228 = vsyncpa [#allocation4], 1

</llo_original>
